<compile_context>
chip_gen: v7x
topology: tpu7x:2x2x1
jax: 0.10.0
libtpu: 0.0.40
codegen_flags: <defaults>
</compile_context>

<pallas_src>
import functools

import jax
import jax.numpy as jnp
from jax.experimental import pallas as pl
from jax.experimental.pallas import tpu as pltpu


def _deconv_kernel(x_ref, w_ref, b_ref, o_ref):
    # x_ref: (1, Cin, T)   w_ref: (Nout, Cin)   b_ref: (Nout, 1)   o_ref: (1, Nout, T)
    # Contraction is over the tiny channel dim; the big spatial dim T stays on
    # lanes so the result is written back as unmasked, lane-dense stores.
    acc = jnp.dot(w_ref[...], x_ref[0], preferred_element_type=jnp.float32)
    o_ref[0] = (acc + b_ref[...]).astype(o_ref.dtype)


def deconv_block_forward(x, weight, bias, scale=2, spatial_tile=2048):
    """x: (N, Cin, D, H, W).  weight: (Cin, Cout, s, s, 1).  bias: (Cout,)."""
    N, Cin, D, H, W = x.shape
    Cin_w, Cout, s, s2, kw = weight.shape
    assert (Cin_w, s, s2, kw) == (Cin, scale, scale, 1)
    Nout = Cout * scale * scale
    P = D * H * W

    # ---- layout glue (no extra HBM pass over x: channels-first pure reshape) --
    x3 = x.reshape(N, Cin, P)
    # (Cin, Cout, s, s, 1) -> (Cin, Nout) -> (Nout, Cin); row q = co*s*s + kd*s + kh
    w_mat = weight.reshape(Cin, Nout).T
    # bias per output channel repeated over the s*s taps, as a column broadcast
    b_col = jnp.repeat(bias, scale * scale).reshape(Nout, 1)

    # ---- lane-dense spatial tile: multiple of 128, padded tail ----------------
    t = max(128, min(spatial_tile, pl.cdiv(P, 128) * 128))
    t = (t // 128) * 128
    P_pad = pl.cdiv(P, t) * t
    if P_pad != P:
        x3 = jnp.pad(x3, ((0, 0), (0, 0), (0, P_pad - P)))

    # Per step: (Cin + Nout) * t * 4 bytes double-buffered (< ~1.2 MB even at
    # t=4096) -> comfortably inside default scoped VMEM on v5e/v6e/v7x, so no
    # explicit vmem_limit_bytes is needed.
    grid = (N, P_pad // t)  # all output blocks disjoint -> both axes parallel

    y_mat = pl.pallas_call(
        _deconv_kernel,
        out_shape=jax.ShapeDtypeStruct((N, Nout, P_pad), x.dtype),
        grid_spec=pltpu.PrefetchScalarGridSpec(
            num_scalar_prefetch=0,
            grid=grid,
            in_specs=[
                pl.BlockSpec((1, Cin, t), lambda n, j: (n, 0, j)),
                pl.BlockSpec((Nout, Cin), lambda n, j: (0, 0)),  # weights resident
                pl.BlockSpec((Nout, 1), lambda n, j: (0, 0)),    # bias column
            ],
            out_specs=pl.BlockSpec((1, Nout, t), lambda n, j: (n, 0, j)),
        ),
        compiler_params=pltpu.CompilerParams(
            dimension_semantics=("parallel", "parallel")),
    )(x3, w_mat, b_col)

    # ---- scatter the s*s taps back onto the upsampled spatial grid ------------
    y = y_mat[:, :, :P] if P_pad != P else y_mat
    y = y.reshape(N, Cout, scale, scale, D, H, W)      # (n, co, kd, kh, d, h, w)
    y = jnp.transpose(y, (0, 1, 4, 2, 5, 3, 6))        # (n, co, d, kd, h, kh, w)
    # TODO(synk): this final tap-scatter transpose is plain-JAX glue; fuse it
    # into the consumer if the surrounding model can take the (N, Cout*s*s, D*H*W) slab.
    return y.reshape(N, Cout, D * scale, H * scale, W)


def _reference_forward(x, weight, bias, scale=2):
    """Pure-JAX reference of ConvTranspose3d with k == s, padding=0."""
    N, Cin, D, H, W = x.shape
    Cout = weight.shape[1]
    y = jnp.einsum("ncdhw,cokl->ndhwokl", x, weight[..., 0])
    y = y + bias[None, None, None, None, :, None, None]
    y = jnp.transpose(y, (0, 4, 1, 5, 2, 6, 3))
    return y.reshape(N, Cout, D * scale, H * scale, W)


if __name__ == "__main__":
    key = jax.random.PRNGKey(0)
    k1, k2, k3 = jax.random.split(key, 3)

    scale = 2
    N, Cin, Cout = 2, 4, 8
    D, H, W = 8, 8, 8   # D*H*W = 512 -> one lane-dense 512-wide tile per batch

    x = jax.random.normal(k1, (N, Cin, D, H, W), dtype=jnp.float32)
    # nn.ConvTranspose3d weight shape: (in_channels, out_channels, kD, kH, kW)
    weight = jax.random.normal(k2, (Cin, Cout, scale, scale, 1), dtype=jnp.float32) * 0.1
    bias = jax.random.normal(k3, (Cout,), dtype=jnp.float32) * 0.1

    fwd = jax.jit(functools.partial(deconv_block_forward, scale=scale))
    out = jax.block_until_ready(fwd(x, weight, bias))

    ref = _reference_forward(x, weight, bias, scale=scale)
    assert out.shape == (N, Cout, D * scale, H * scale, W)
    assert jnp.allclose(out, ref, atol=1e-5, rtol=1e-5)

    print("KERNEL_OK")
</pallas_src>

<mosaic_0001>
module attributes {stable_mosaic.version = 11 : i64} {
  func.func @_deconv_kernel(%arg0: i32, %arg1: i32, %arg2: memref<1x4x512xf32, #tpu.memory_space<vmem>>, %arg3: memref<32x4xf32, #tpu.memory_space<vmem>>, %arg4: memref<32x1xf32, #tpu.memory_space<vmem>>, %arg5: memref<1x32x512xf32, #tpu.memory_space<vmem>>) attributes {dimension_semantics = [#tpu.dimension_semantics<parallel>, #tpu.dimension_semantics<parallel>], iteration_bounds = array<i64: 2, 1>, scalar_prefetch = 0 : i64, scratch_operands = 0 : i64, tpu.core_type = #tpu.core_type<tc>, window_params = [{transform_indices = @transform_0, window_bounds = array<i64: 1, 4, 512>}, {pipeline_mode = #tpu.pipeline_mode<synchronous>, transform_indices = @transform_1, window_bounds = array<i64: 32, 4>}, {pipeline_mode = #tpu.pipeline_mode<synchronous>, transform_indices = @transform_2, window_bounds = array<i64: 32, 1>}, {transform_indices = @transform_3, window_bounds = array<i64: 1, 32, 512>}]} {
    %c0 = arith.constant 0 : index
    %c0_0 = arith.constant 0 : index
    %0 = vector.load %arg3[%c0, %c0_0] : memref<32x4xf32, #tpu.memory_space<vmem>>, vector<32x4xf32>
    %c0_1 = arith.constant 0 : index
    %c0_2 = arith.constant 0 : index
    %c0_3 = arith.constant 0 : index
    %1 = vector.load %arg2[%c0_1, %c0_2, %c0_3] : memref<1x4x512xf32, #tpu.memory_space<vmem>>, vector<1x4x512xf32>
    %2 = vector.shape_cast %1 : vector<1x4x512xf32> to vector<4x512xf32>
    %cst = arith.constant dense<0.000000e+00> : vector<32x512xf32>
    %3 = tpu.matmul %0, %2, %cst {dimension_numbers = #tpu.dot_dimension_numbers<[1], [0], [0], [1], [0, 0, 1, 1], [], []>} : vector<32x4xf32>, vector<4x512xf32>, vector<32x512xf32> -> vector<32x512xf32>
    %c0_4 = arith.constant 0 : index
    %c0_5 = arith.constant 0 : index
    %4 = vector.load %arg4[%c0_4, %c0_5] : memref<32x1xf32, #tpu.memory_space<vmem>>, vector<32x1xf32>
    %5 = vector.broadcast %4 : vector<32x1xf32> to vector<32x512xf32>
    %6 = arith.addf %3, %5 : vector<32x512xf32>
    %c0_6 = arith.constant 0 : index
    %c0_7 = arith.constant 0 : index
    %c0_8 = arith.constant 0 : index
    %7 = vector.load %arg5[%c0_6, %c0_7, %c0_8] : memref<1x32x512xf32, #tpu.memory_space<vmem>>, vector<1x32x512xf32>
    %8 = vector.shape_cast %7 : vector<1x32x512xf32> to vector<32x512xf32>
    %9 = vector.shape_cast %6 : vector<32x512xf32> to vector<1x32x512xf32>
    tpu.vector_store %arg5[%c0_6, %c0_7, %c0_8], %9 {strides = array<i32>} : memref<1x32x512xf32, #tpu.memory_space<vmem>>, vector<1x32x512xf32>,
    return
  }
  func.func @transform_0(%arg0: i32, %arg1: i32) -> (i32, i32, i32) {
    %c0_i32 = arith.constant 0 : i32
    %c0_i32_0 = arith.constant 0 : i32
    return %arg0, %c0_i32, %arg1 : i32, i32, i32
  }
  func.func @transform_1(%arg0: i32, %arg1: i32) -> (i32, i32) {
    %c0_i32 = arith.constant 0 : i32
    %c0_i32_0 = arith.constant 0 : i32
    %c0_i32_1 = arith.constant 0 : i32
    return %c0_i32, %c0_i32_0 : i32, i32
  }
  func.func @transform_2(%arg0: i32, %arg1: i32) -> (i32, i32) {
    %c0_i32 = arith.constant 0 : i32
    %c0_i32_0 = arith.constant 0 : i32
    %c0_i32_1 = arith.constant 0 : i32
    return %c0_i32, %c0_i32_0 : i32, i32
  }
  func.func @transform_3(%arg0: i32, %arg1: i32) -> (i32, i32, i32) {
    %c0_i32 = arith.constant 0 : i32
    %c0_i32_0 = arith.constant 0 : i32
    return %arg0, %c0_i32, %arg1 : i32, i32, i32
  }
}

</mosaic_0001>

<llo_original>
// kernel: deconv_block_forward.1
$region0: #{deconv_block_forward.1}
  #allocation0 [shape = 'u32[]', space=smem, size = 0x4, offset = 0x4, fixed_abs, tag = 'smem constant byte address 0x4 - core index']
  #allocation1 [shape = 'u32[144,128]{1,0:T(1,128)}', space=vmem, size = 0x12000, scoped, tag = 'internal scratch']
  %s0 = inlined_call_operand.vmem [shape: f32[2,4,512], index: 0, kind: input, shape index: {}]
  %s1 = inlined_call_operand.vmem [shape: f32[32,4], index: 1, kind: input, shape index: {}]
  %s2 = inlined_call_operand.vmem [shape: f32[32,1], index: 2, kind: input, shape index: {}]
  %s3 = inlined_call_operand.vmem [shape: f32[2,32,512], index: 3, kind: output, shape index: {}]
  %s4 = sld [smem:[#allocation0]]
  $region45: #{deconv_block_forward.1} parent=0
    _
  %s6 = ssub.s32 1, %s4
  %s7 = scalar_select 0, %s6, %s4
  loop: start=0, step=1, limit=4
  $region2: #{deconv_block_forward.1} parent=0 // loop_pre_header
    _
  $region3: #{deconv_block_forward.1} parent=0 // loop_header
    %s9 = sphi 0, %s13
    %p10 = scmp.ge.s32.totalorder %s9, 4
    %s16 = sphi 0, %s28
    %s17 = sphi 0, %s24
    %s18 = sphi 0, %s16
    %s19 = sphi 0, %s17
    %s20 = sphi 0, %s18
    %s21 = sphi 0, %s19
    %s33 = sphi 0, %s35
    %s36 = sphi 0, %s33
    %s37 = sphi 0, %s36
    %s53 = sphi 0, %s37
    %s57 = sphi 0, %s57
    %s59 = sphi 0, %s57
    %s60 = sphi 0, %s59
    %s74 = sphi 0, %s60
    %s78 = sphi 0, %s78
    %s80 = sphi 0, %s78
    %s81 = sphi 0, %s80
    %s95 = sphi 0, %s81
    %s103 = sphi 0, %s105
    %s106 = sphi 0, %s103
    %s107 = sphi 0, %s106
    %s123 = sphi 0, %s107
  $region4: #{deconv_block_forward.1} parent=0 // loop_header_branch
    %12 = sbr.rel (%p10) target = $region8
  $region5: #{deconv_block_forward.1} parent=0 // loop_body
    %s14 = ssub.s32 %s9, 1
    %s15 = ssub.s32 %s9, 2
    %s22 = sadd.s32 1, %s17
    %p23 = scmp.ge.s32.totalorder %s22, 1
    %s24 = scalar_select %p23, 0, %s22
    %s25 = sadd.s32 1, %s16
    %s26 = scalar_select %p23, %s25, %s16
    %p27 = scmp.ge.s32.totalorder %s26, 2
    %s28 = scalar_select %p27, 0, %s26
    %s29 = ssub.s32 %s16, %s28
    %s30 = ssub.s32 %s17, %s24
    %s31 = sor.u32 %s29, %s30
    %p32 = scmp.eq.s32.totalorder %s31, 0
    %s34 = sadd.s32 %s33, 1
    %s35 = scalar_select %p32, %s33, %s34
    %p38 = pneg %p32
    %p39 = scmp.eq.s32.totalorder %s9, 1
    %p40 = por %p38, %p39
    %p41 = scmp.ne.s32.totalorder %s33, %s36
    %p42 = scmp.eq.s32.totalorder %s9, 0
    %p43 = por %p41, %p42
    %p44 = scmp.ne.s32.totalorder %s33, %s36
    %p45 = scmp.eq.s32.totalorder %s14, 1
    %p46 = por %p44, %p45
    %p47 = scmp.ne.s32.totalorder %s36, %s37
    %p48 = scmp.eq.s32.totalorder %s14, 0
    %p49 = por %p47, %p48
    %p50 = scmp.ne.s32.totalorder %s36, %s37
    %p51 = scmp.eq.s32.totalorder %s15, 1
    %p52 = por %p50, %p51
    %p54 = scmp.ne.s32.totalorder %s37, %s53
    %p55 = scmp.eq.s32.totalorder %s15, 0
    %p56 = por %p54, %p55
    %s58 = sadd.s32 %s57, 1
    %p61 = scmp.eq.s32.totalorder %s9, 1
    %p62 = scmp.ne.s32.totalorder %s57, %s59
    %p63 = scmp.eq.s32.totalorder %s9, 0
    %p64 = por %p62, %p63
    %p65 = scmp.ne.s32.totalorder %s57, %s59
    %p66 = scmp.eq.s32.totalorder %s14, 1
    %p67 = por %p65, %p66
    %p68 = scmp.ne.s32.totalorder %s59, %s60
    %p69 = scmp.eq.s32.totalorder %s14, 0
    %p70 = por %p68, %p69
    %p71 = scmp.ne.s32.totalorder %s59, %s60
    %p72 = scmp.eq.s32.totalorder %s15, 1
    %p73 = por %p71, %p72
    %p75 = scmp.ne.s32.totalorder %s60, %s74
    %p76 = scmp.eq.s32.totalorder %s15, 0
    %p77 = por %p75, %p76
    %s79 = sadd.s32 %s78, 1
    %p82 = scmp.eq.s32.totalorder %s9, 1
    %p83 = scmp.ne.s32.totalorder %s78, %s80
    %p84 = scmp.eq.s32.totalorder %s9, 0
    %p85 = por %p83, %p84
    %p86 = scmp.ne.s32.totalorder %s78, %s80
    %p87 = scmp.eq.s32.totalorder %s14, 1
    %p88 = por %p86, %p87
    %p89 = scmp.ne.s32.totalorder %s80, %s81
    %p90 = scmp.eq.s32.totalorder %s14, 0
    %p91 = por %p89, %p90
    %p92 = scmp.ne.s32.totalorder %s80, %s81
    %p93 = scmp.eq.s32.totalorder %s15, 1
    %p94 = por %p92, %p93
    %p96 = scmp.ne.s32.totalorder %s81, %s95
    %p97 = scmp.eq.s32.totalorder %s15, 0
    %p98 = por %p96, %p97
    %s99 = ssub.s32 %s16, %s28
    %s100 = ssub.s32 %s17, %s24
    %s101 = sor.u32 %s99, %s100
    %p102 = scmp.eq.s32.totalorder %s101, 0
    %s104 = sadd.s32 %s103, 1
    %s105 = scalar_select %p102, %s103, %s104
    %p108 = pneg %p102
    %p109 = scmp.eq.s32.totalorder %s9, 1
    %p110 = por %p108, %p109
    %p111 = scmp.ne.s32.totalorder %s103, %s106
    %p112 = scmp.eq.s32.totalorder %s9, 0
    %p113 = por %p111, %p112
    %p114 = scmp.ne.s32.totalorder %s103, %s106
    %p115 = scmp.eq.s32.totalorder %s14, 1
    %p116 = por %p114, %p115
    %p117 = scmp.ne.s32.totalorder %s106, %s107
    %p118 = scmp.eq.s32.totalorder %s14, 0
    %p119 = por %p117, %p118
    %p120 = scmp.ne.s32.totalorder %s106, %s107
    %p121 = scmp.eq.s32.totalorder %s15, 1
    %p122 = por %p120, %p121
    %p124 = scmp.ne.s32.totalorder %s107, %s123
    %p125 = scmp.eq.s32.totalorder %s15, 0
    %p126 = por %p124, %p125
    %p127 = scmp.le.s32.totalorder 1, %s9
    %p128 = scmp.lt.s32.totalorder %s9, 3
    %p129 = pnand %p127, %p128
    %p130 = pneg %p129
    // Predicated region
    $region9: #{deconv_block_forward.1} parent=5 // pred_check
      _
    $region10: #{deconv_block_forward.1} parent=5 // pred_check_branch
      %132 = sbr.rel (%p129) target = $region12
    $region11: #{deconv_block_forward.1} parent=5 // pred_region
      %s133 = ssub.s32 %s9, 1
      // Predicated region
      $region13: #{deconv_block_forward.1} parent=11 // pred_check
        %p134 = pneg %p70
      $region14: #{deconv_block_forward.1} parent=11 // pred_check_branch
        %136 = sbr.rel (%p134) target = $region16
      $region15: #{deconv_block_forward.1} parent=11 // pred_region
        _
      $region16: #{deconv_block_forward.1} parent=11 // pred_fallthru
        _
      // Predicated region
      $region17: #{deconv_block_forward.1} parent=11 // pred_check
        %p137 = pneg %p91
      $region18: #{deconv_block_forward.1} parent=11 // pred_check_branch
        %139 = sbr.rel (%p137) target = $region20
      $region19: #{deconv_block_forward.1} parent=11 // pred_region
        _
      $region20: #{deconv_block_forward.1} parent=11 // pred_fallthru
        _
    $region12: #{deconv_block_forward.1} parent=5 // pred_fallthru
      _
    %p140 = scmp.lt.s32.totalorder %s9, 2
    // Predicated region
    $region21: #{deconv_block_forward.1} parent=5 // pred_check
      %p141 = pneg %p140
    $region22: #{deconv_block_forward.1} parent=5 // pred_check_branch
      %143 = sbr.rel (%p141) target = $region24
    $region23: #{deconv_block_forward.1} parent=5 // pred_region
      // Predicated region
      $region25: #{deconv_block_forward.1} parent=23 // pred_check
        %p144 = pneg %p43
      $region26: #{deconv_block_forward.1} parent=23 // pred_check_branch
        %146 = sbr.rel (%p144) target = $region28
      $region27: #{deconv_block_forward.1} parent=23 // pred_region
        %s147 = smul.u32 4, %s17
        %p148 = scmp.lt.s32.totalorder %s16, 1
        %s149 = scalar_select %p148, %s16, 1
        %p150 = scmp.lt.s32.totalorder %s147, 3
        %s151 = scalar_select %p150, %s147, 3
        %s152 = smul.addr %s149, 4
        %s153 = sadd.s32 %s151, %s152
        %s154 = smul.addr %s153, 4
        %s155 = scalar_lea.vmem %s0, %s154
        %s156 = smul.u32 4, %s17
      $region28: #{deconv_block_forward.1} parent=23 // pred_fallthru
        _
    $region24: #{deconv_block_forward.1} parent=5 // pred_fallthru
      _
    %p157 = scmp.le.s32.totalorder 1, %s9
    %p158 = scmp.lt.s32.totalorder %s9, 3
    %p159 = pnand %p157, %p158
    %p160 = pneg %p159
    // Predicated region
    $region29: #{deconv_block_forward.1} parent=5 // pred_check
      _
    $region30: #{deconv_block_forward.1} parent=5 // pred_check_branch
      %162 = sbr.rel (%p159) target = $region32
    $region31: #{deconv_block_forward.1} parent=5 // pred_region
      %s163 = ssub.s32 %s9, 1
      %s164 = smul.u32 4, %s19
      %p165 = scmp.lt.s32.totalorder %s18, 1
      %s166 = scalar_select %p165, %s18, 1
      %p167 = scmp.lt.s32.totalorder %s164, 3
      %s168 = scalar_select %p167, %s164, 3
      %s169 = smul.addr %s166, 4
      %s170 = sadd.s32 %s168, %s169
      %s171 = smul.addr %s170, 4
      %s172 = scalar_lea.vmem %s0, %s171
      %p173 = pneg %p49
      %p174 = pneg %p46
      %p175 = pneg %p70
      %p176 = pneg %p67
      %p177 = pneg %p91
      %p178 = pneg %p88
      %p179 = pneg %p119
      %p180 = pneg %p116
      %s181 = smul.u32 4, %s19
      %p182 = scmp.lt.s32.totalorder %s18, 1
      %s183 = scalar_select %p182, %s18, 1
      %p184 = scmp.lt.s32.totalorder %s181, 3
      %s185 = scalar_select %p184, %s181, 3
      %s186 = smul.addr %s183, 16
      %s187 = sadd.s32 %s185, %s186
      %s188 = smul.addr %s187, 8
      %s189 = scalar_lea.vmem %s3, %s188
      %s190 = smul.u32 4, %s19
      %p191 = scmp.lt.s32.totalorder %s18, 1
      %s192 = scalar_select %p191, %s18, 1
      %p193 = scmp.lt.s32.totalorder %s190, 3
      %s194 = scalar_select %p193, %s190, 3
      %s195 = smul.addr %s192, 4
      %s196 = sadd.s32 %s194, %s195
      %s197 = smul.addr %s196, 4
      %s198 = scalar_lea.vmem %s0, %s197
      %s199 = smul.u32 4, %s19
      %s200 = smul.u32 4, %s19
      %p201 = scmp.lt.s32.totalorder %s18, 1
      %s202 = scalar_select %p201, %s18, 1
      %p203 = scmp.lt.s32.totalorder %s200, 3
      %s204 = scalar_select %p203, %s200, 3
      %s205 = smul.addr %s202, 16
      %s206 = sadd.s32 %s204, %s205
      %s207 = smul.addr %s206, 8
      %s208 = scalar_lea.vmem %s3, %s207
      %s209 = smul.u32 4, %s19
      %v210 = vld [vmem:[%s1] sm:$0xff]
      %v211 = vld [vmem:[%s1 + $0x8] sm:$0xff]
      %v212 = vld [vmem:[%s1 + $0x10] sm:$0xff]
      %v213 = vld [vmem:[%s1 + $0x18] sm:$0xff]
      %v214 = vld [vmem:[%s198] sm:$0xff]
      %v215 = vld [vmem:[%s198 + $0x8] sm:$0xff]
      %v216 = vld [vmem:[%s2] sm:$0xff]
      %v217 = vld [vmem:[%s2 + $0x8] sm:$0xff]
      %v218 = vld [vmem:[%s2 + $0x10] sm:$0xff]
      %v219 = vld [vmem:[%s2 + $0x18] sm:$0xff]
      %221 = vset.pattern.permute.xlu0 0
      %222 = vperm.xlu0 %221, %v216
      %v223 = vpop.permute.xlu0 %222
      %226 = vset.pattern.permute.xlu0 0
      %227 = vperm.xlu0 %226, %v217
      %v228 = vpop.permute.xlu0 %227
      %231 = vset.pattern.permute.xlu0 0
      %232 = vperm.xlu0 %231, %v218
      %v233 = vpop.permute.xlu0 %232
      %236 = vset.pattern.permute.xlu0 0
      %237 = vperm.xlu0 %236, %v219
      %v238 = vpop.permute.xlu0 %237
      %v242 = vcombine.high %v214, %v214
      %v243 = vcombine.high %v215, %v215
      %vm244 = vcmask 31744
      %v246 = vsel %vm244, %v210, 0
      %v249 = vsel %vm244, %v211, 0
      %v252 = vsel %vm244, %v212, 0
      %v255 = vsel %vm244, %v213, 0
      %vm257 = vcmask 1043456
      %v258 = vsel %vm257, %v214, 0
      %v260 = vsel %vm257, %v242, 0
      %v262 = vsel %vm257, %v215, 0
      %v264 = vsel %vm257, %v243, 0
      %266 = vmatprep.subr.mxu0 %v260
      %267 = vmatpush1.msra.mxu0 %v258
      %268 = vmatprep.subr.mxu0 0.0
      %269 = vmatpush1.msra.mxu0 0.0
      %270 = vmatprep.subr.mxu0 0.0
      %271 = vmatpush1.msra.mxu0 0.0
      %272 = vmatprep.subr.mxu0 0.0
      %273 = vmatpush1.msra.mxu0 0.0
      %274 = vmatprep.subr.mxu0 0.0
      %275 = vmatpush1.msra.mxu0 0.0
      %276 = vmatprep.subr.mxu0 0.0
      %277 = vmatpush1.msra.mxu0 0.0
      %278 = vmatprep.subr.mxu0 0.0
      %279 = vmatpush1.msra.mxu0 0.0
      %280 = vmatprep.subr.mxu0 0.0
      %281 = vmatpush1.msra.mxu0 0.0
      %282 = vmatprep.subr.mxu0 0.0
      %283 = vmatpush1.msra.mxu0 0.0
      %284 = vmatprep.subr.mxu0 0.0
      %285 = vmatpush1.msra.mxu0 0.0
      %286 = vmatprep.subr.mxu0 0.0
      %287 = vmatpush1.msra.mxu0 0.0
      %288 = vmatprep.subr.mxu0 0.0
      %289 = vmatpush1.msra.mxu0 0.0
      %290 = vmatprep.subr.mxu0 0.0
      %291 = vmatpush1.msra.mxu0 0.0
      %292 = vmatprep.subr.mxu0 0.0
      %293 = vmatpush1.msra.mxu0 0.0
      %294 = vmatprep.subr.mxu0 0.0
      %295 = vmatpush1.msra.mxu0 0.0
      %296 = vmatprep.subr.mxu0 0.0
      %297 = vmatpush1.msra.mxu0 0.0
      %298 = vmatprep.subr.mxu0 0.0
      %299 = vmatpush1.msra.mxu0 0.0
      %300 = vmatprep.subr.mxu0 0.0
      %301 = vmatpush1.msra.mxu0 0.0
      %302 = vmatprep.subr.mxu0 0.0
      %303 = vmatpush1.msra.mxu0 0.0
      %304 = vmatprep.subr.mxu0 0.0
      %305 = vmatpush1.msra.mxu0 0.0
      %306 = vmatprep.subr.mxu0 0.0
      %307 = vmatpush1.msra.mxu0 0.0
      %308 = vmatprep.subr.mxu0 0.0
      %309 = vmatpush1.msra.mxu0 0.0
      %310 = vmatprep.subr.mxu0 0.0
      %311 = vmatpush1.msra.mxu0 0.0
      %312 = vmatprep.subr.mxu0 0.0
      %313 = vmatpush1.msra.mxu0 0.0
      %314 = vmatprep.subr.mxu0 0.0
      %315 = vmatpush1.msra.mxu0 0.0
      %316 = vmatprep.subr.mxu0 0.0
      %317 = vmatpush1.msra.mxu0 0.0
      %318 = vmatprep.subr.mxu0 0.0
      %319 = vmatpush1.msra.mxu0 0.0
      %320 = vmatprep.subr.mxu0 0.0
      %321 = vmatpush1.msra.mxu0 0.0
      %322 = vmatprep.subr.mxu0 0.0
      %323 = vmatpush1.msra.mxu0 0.0
      %324 = vmatprep.subr.mxu0 0.0
      %325 = vmatpush1.msra.mxu0 0.0
      %326 = vmatprep.subr.mxu0 0.0
      %327 = vmatpush1.msra.mxu0 0.0
      %328 = vmatprep.subr.mxu0 0.0
      %329 = vmatpush1.msra.mxu0 0.0
      %330 = vmatprep.mubr.f32.mxu0 0.0
      %331 = vmatmul.mubr.f32.gmra.mrb[0].mxu0 %v246
      %v332 = vpop.f32.mrb[0].mxu0
      %v333 = vadd.f32 %v223, %v332
      %v334 = vpop.f32.mrb[0].mxu0
      %v335 = vadd.f32 %v223, %v334
      %336 = vmatprep.mubr.f32.mxu0 0.0
      %337 = vmatmul.mubr.f32.gmra.mrb[0].mxu0 %v249
      %v338 = vpop.f32.mrb[0].mxu0
      %v339 = vadd.f32 %v228, %v338
      %v340 = vpop.f32.mrb[0].mxu0
      %v341 = vadd.f32 %v228, %v340
      %342 = vmatprep.mubr.f32.mxu0 0.0
      %343 = vmatmul.mubr.f32.gmra.mrb[0].mxu0 %v252
      %v344 = vpop.f32.mrb[0].mxu0
      %v345 = vadd.f32 %v233, %v344
      %v346 = vpop.f32.mrb[0].mxu0
      %v347 = vadd.f32 %v233, %v346
      %348 = vmatprep.mubr.f32.mxu0 0.0
      %349 = vmatmul.mubr.f32.gmra.mrb[0].mxu0 %v255
      %v350 = vpop.f32.mrb[0].mxu0
      %v351 = vadd.f32 %v238, %v350
      %v352 = vpop.f32.mrb[0].mxu0
      %v353 = vadd.f32 %v238, %v352
      %354 = vdwg.mxu0
      %355 = vmatprep.subr.mxu0 %v264
      %356 = vmatpush1.msra.mxu0 %v262
      %357 = vmatprep.subr.mxu0 0.0
      %358 = vmatpush1.msra.mxu0 0.0
      %359 = vmatprep.subr.mxu0 0.0
      %360 = vmatpush1.msra.mxu0 0.0
      %361 = vmatprep.subr.mxu0 0.0
      %362 = vmatpush1.msra.mxu0 0.0
      %363 = vmatprep.subr.mxu0 0.0
      %364 = vmatpush1.msra.mxu0 0.0
      %365 = vmatprep.subr.mxu0 0.0
      %366 = vmatpush1.msra.mxu0 0.0
      %367 = vmatprep.subr.mxu0 0.0
      %368 = vmatpush1.msra.mxu0 0.0
      %369 = vmatprep.subr.mxu0 0.0
      %370 = vmatpush1.msra.mxu0 0.0
      %371 = vmatprep.subr.mxu0 0.0
      %372 = vmatpush1.msra.mxu0 0.0
      %373 = vmatprep.subr.mxu0 0.0
      %374 = vmatpush1.msra.mxu0 0.0
      %375 = vmatprep.subr.mxu0 0.0
      %376 = vmatpush1.msra.mxu0 0.0
      %377 = vmatprep.subr.mxu0 0.0
      %378 = vmatpush1.msra.mxu0 0.0
      %379 = vmatprep.subr.mxu0 0.0
      %380 = vmatpush1.msra.mxu0 0.0
      %381 = vmatprep.subr.mxu0 0.0
      %382 = vmatpush1.msra.mxu0 0.0
      %383 = vmatprep.subr.mxu0 0.0
      %384 = vmatpush1.msra.mxu0 0.0
      %385 = vmatprep.subr.mxu0 0.0
      %386 = vmatpush1.msra.mxu0 0.0
      %387 = vmatprep.subr.mxu0 0.0
      %388 = vmatpush1.msra.mxu0 0.0
      %389 = vmatprep.subr.mxu0 0.0
      %390 = vmatpush1.msra.mxu0 0.0
      %391 = vmatprep.subr.mxu0 0.0
      %392 = vmatpush1.msra.mxu0 0.0
      %393 = vmatprep.subr.mxu0 0.0
      %394 = vmatpush1.msra.mxu0 0.0
      %395 = vmatprep.subr.mxu0 0.0
      %396 = vmatpush1.msra.mxu0 0.0
      %397 = vmatprep.subr.mxu0 0.0
      %398 = vmatpush1.msra.mxu0 0.0
      %399 = vmatprep.subr.mxu0 0.0
      %400 = vmatpush1.msra.mxu0 0.0
      %401 = vmatprep.subr.mxu0 0.0
      %402 = vmatpush1.msra.mxu0 0.0
      %403 = vmatprep.subr.mxu0 0.0
      %404 = vmatpush1.msra.mxu0 0.0
      %405 = vmatprep.subr.mxu0 0.0
      %406 = vmatpush1.msra.mxu0 0.0
      %407 = vmatprep.subr.mxu0 0.0
      %408 = vmatpush1.msra.mxu0 0.0
      %409 = vmatprep.subr.mxu0 0.0
      %410 = vmatpush1.msra.mxu0 0.0
      %411 = vmatprep.subr.mxu0 0.0
      %412 = vmatpush1.msra.mxu0 0.0
      %413 = vmatprep.subr.mxu0 0.0
      %414 = vmatpush1.msra.mxu0 0.0
      %415 = vmatprep.subr.mxu0 0.0
      %416 = vmatpush1.msra.mxu0 0.0
      %417 = vmatprep.subr.mxu0 0.0
      %418 = vmatpush1.msra.mxu0 0.0
      %419 = vmatprep.mubr.f32.mxu0 0.0
      %420 = vmatmul.mubr.f32.gmra.mrb[0].mxu0 %v246
      %v421 = vpop.f32.mrb[0].mxu0
      %v422 = vadd.f32 %v223, %v421
      %v423 = vpop.f32.mrb[0].mxu0
      %v424 = vadd.f32 %v223, %v423
      %425 = vmatprep.mubr.f32.mxu0 0.0
      %426 = vmatmul.mubr.f32.gmra.mrb[0].mxu0 %v249
      %v427 = vpop.f32.mrb[0].mxu0
      %v428 = vadd.f32 %v228, %v427
      %v429 = vpop.f32.mrb[0].mxu0
      %v430 = vadd.f32 %v228, %v429
      %431 = vmatprep.mubr.f32.mxu0 0.0
      %432 = vmatmul.mubr.f32.gmra.mrb[0].mxu0 %v252
      %v433 = vpop.f32.mrb[0].mxu0
      %v434 = vadd.f32 %v233, %v433
      %v435 = vpop.f32.mrb[0].mxu0
      %v436 = vadd.f32 %v233, %v435
      %437 = vmatprep.mubr.f32.mxu0 0.0
      %438 = vmatmul.mubr.f32.gmra.mrb[0].mxu0 %v255
      %v439 = vpop.f32.mrb[0].mxu0
      %v440 = vadd.f32 %v238, %v439
      %v441 = vpop.f32.mrb[0].mxu0
      %v442 = vadd.f32 %v238, %v441
      %443 = vdwg.mxu0
      %444 = vst [vmem:[%s208] sm:$0xff] %v333
      %445 = vst [vmem:[%s208 + $0x8] sm:$0xff] %v335
      %446 = vst [vmem:[%s208 + $0x10] sm:$0xff] %v422
      %447 = vst [vmem:[%s208 + $0x18] sm:$0xff] %v424
      %448 = vst [vmem:[%s208 + $0x20] sm:$0xff] %v339
      %449 = vst [vmem:[%s208 + $0x28] sm:$0xff] %v341
      %450 = vst [vmem:[%s208 + $0x30] sm:$0xff] %v428
      %451 = vst [vmem:[%s208 + $0x38] sm:$0xff] %v430
      %452 = vst [vmem:[%s208 + $0x40] sm:$0xff] %v345
      %453 = vst [vmem:[%s208 + $0x48] sm:$0xff] %v347
      %454 = vst [vmem:[%s208 + $0x50] sm:$0xff] %v434
      %455 = vst [vmem:[%s208 + $0x58] sm:$0xff] %v436
      %456 = vst [vmem:[%s208 + $0x60] sm:$0xff] %v351
      %457 = vst [vmem:[%s208 + $0x68] sm:$0xff] %v353
      %458 = vst [vmem:[%s208 + $0x70] sm:$0xff] %v440
      %459 = vst [vmem:[%s208 + $0x78] sm:$0xff] %v442
      %s460 = smul.u32 4, %s19
      %p461 = scmp.lt.s32.totalorder %s18, 1
      %s462 = scalar_select %p461, %s18, 1
      %p463 = scmp.lt.s32.totalorder %s460, 3
      %s464 = scalar_select %p463, %s460, 3
      %s465 = smul.addr %s462, 16
      %s466 = sadd.s32 %s464, %s465
      %s467 = smul.addr %s466, 8
      %s468 = scalar_lea.vmem %s3, %s467
      // Predicated region
      $region33: #{deconv_block_forward.1} parent=31 // pred_check
        %p469 = pneg %p116
      $region34: #{deconv_block_forward.1} parent=31 // pred_check_branch
        %471 = sbr.rel (%p469) target = $region36
      $region35: #{deconv_block_forward.1} parent=31 // pred_region
        %s472 = smul.u32 4, %s19
      $region36: #{deconv_block_forward.1} parent=31 // pred_fallthru
        _
    $region32: #{deconv_block_forward.1} parent=5 // pred_fallthru
      _
    %p473 = scmp.le.s32.totalorder 2, %s9
    // Predicated region
    $region37: #{deconv_block_forward.1} parent=5 // pred_check
      %p474 = pneg %p473
    $region38: #{deconv_block_forward.1} parent=5 // pred_check_branch
      %476 = sbr.rel (%p474) target = $region40
    $region39: #{deconv_block_forward.1} parent=5 // pred_region
      %s477 = ssub.s32 %s9, 2
      // Predicated region
      $region41: #{deconv_block_forward.1} parent=39 // pred_check
        %p478 = pneg %p122
      $region42: #{deconv_block_forward.1} parent=39 // pred_check_branch
        %480 = sbr.rel (%p478) target = $region44
      $region43: #{deconv_block_forward.1} parent=39 // pred_region
        %s481 = smul.u32 4, %s21
        %p482 = scmp.lt.s32.totalorder %s20, 1
        %s483 = scalar_select %p482, %s20, 1
        %p484 = scmp.lt.s32.totalorder %s481, 3
        %s485 = scalar_select %p484, %s481, 3
        %s486 = smul.addr %s483, 16
        %s487 = sadd.s32 %s485, %s486
        %s488 = smul.addr %s487, 8
        %s489 = scalar_lea.vmem %s3, %s488
      $region44: #{deconv_block_forward.1} parent=39 // pred_fallthru
        _
    $region40: #{deconv_block_forward.1} parent=5 // pred_fallthru
      _
  $region6: #{deconv_block_forward.1} parent=0 // loop_footer
    %s13 = sadd.s32 1, %s9
  $region7: #{deconv_block_forward.1} parent=0 // loop_footer_branch
    %8 = sbr.rel target = $region3
  $region8: #{deconv_block_forward.1} parent=0 // loop_exit
    _

</llo_original>
